<compile_context>
chip_gen: v5e
topology: v5e:2x2
jax: 0.10.0
libtpu: 0.0.40
codegen_flags: <defaults>
</compile_context>

<pallas_src>
import functools

import jax
import jax.numpy as jnp
from jax.experimental import pallas as pl
from jax.experimental.pallas import tpu as pltpu


def _round_up(v, m):
    return ((v + m - 1) // m) * m


def _round_down(v, m):
    return max(m, (v // m) * m)


# ---------------------------------------------------------------------------
# Kernels
# ---------------------------------------------------------------------------

def _embed_kernel_nat(x_ref, w_ref, b_ref, o_ref):
    # Natural orientation: out = one_hot @ W^T + b, emitted in final layout.
    # x_ref: (tile_n, 1) int32
    # w_ref: (n_symboles, output_size) f32 == W^T, VMEM-resident
    # b_ref: (1, output_size) f32
    # o_ref: (tile_n, output_size) f32, lane-dense (output_size % 128 == 0)
    ids = x_ref[...]                                            # (tile_n, 1)
    n_symboles = w_ref.shape[0]
    cols = jax.lax.broadcasted_iota(jnp.int32, (ids.shape[0], n_symboles), 1)
    one_hot = (cols == ids).astype(jnp.float32)                 # (tile_n, V)
    o_ref[...] = jnp.dot(one_hot, w_ref[...],
                         preferred_element_type=jnp.float32) + b_ref[...]


def _embed_kernel_t(x_ref, w_ref, b_ref, o_ref):
    # Transposed orientation (feature dim not a 128 multiple, e.g. D=32):
    # out^T = W @ one_hot^T + b; lane axis = tile_n -> full-lane stores.
    # x_ref: (1, tile_n) int32
    # w_ref: (output_size, n_symboles) f32, VMEM-resident
    # b_ref: (output_size, 1) f32
    # o_ref: (output_size, tile_n) f32
    ids = x_ref[...]                                            # (1, tile_n)
    n_symboles = w_ref.shape[1]
    rows = jax.lax.broadcasted_iota(jnp.int32, (n_symboles, ids.shape[1]), 0)
    one_hot_t = (rows == ids).astype(jnp.float32)               # (V, tile_n)
    o_ref[...] = jnp.dot(w_ref[...], one_hot_t,
                         preferred_element_type=jnp.float32) + b_ref[...]


def _onehot_kernel_nat(x_ref, o_ref, *, n_symboles):
    # label=True, natural orientation: o_ref (tile_n, n_symboles).
    ids = x_ref[...]                                            # (tile_n, 1)
    cols = jax.lax.broadcasted_iota(jnp.int32, (ids.shape[0], n_symboles), 1)
    o_ref[...] = (cols == ids).astype(jnp.float32)


def _onehot_kernel_t(x_ref, o_ref, *, n_symboles):
    # label=True, transposed orientation: o_ref (n_symboles, tile_n).
    ids = x_ref[...]                                            # (1, tile_n)
    rows = jax.lax.broadcasted_iota(jnp.int32, (n_symboles, ids.shape[1]), 0)
    o_ref[...] = (rows == ids).astype(jnp.float32)


# ---------------------------------------------------------------------------
# Tiling / VMEM budgeting
# ---------------------------------------------------------------------------

_TARGET_BLOCK_BYTES = 2 << 20     # ~2 MiB output block per grid step
_VMEM_SCALING_BUDGET = 28 << 20   # budget for everything that scales with tile_n
_VMEM_LIMIT_CAP = 40 << 20        # safe on v7x (64 MiB phys/TC) and v5e/v6e
_MIN_GRID = 4                     # keep >= ~4 steps so v7x's 2 TCs both get work


def _choose_tile_n(n, feat, n_symboles, resident_bytes, out_buffers):
    """Pick the token-tile size by bytes, not a fixed constant."""
    n_128 = _round_up(max(n, 1), 128)
    # Bytes that scale with tile_n: `out_buffers` output buffers, 2 index
    # buffers, and the in-kernel f32 one-hot temporary.
    per_token = 4 * (out_buffers * feat + 2 + n_symboles)
    if resident_bytes < _VMEM_SCALING_BUDGET:
        vmem_cap = _round_down((_VMEM_SCALING_BUDGET - resident_bytes) // per_token, 128)
    else:
        vmem_cap = 128
    target = _round_up(max(_TARGET_BLOCK_BYTES // (4 * feat), 1), 128)
    tile = min(target, vmem_cap, n_128)
    # Keep the grid >= _MIN_GRID when there is enough work (v7x megacore);
    # on 1-TC chips the ~2 MiB blocks already sit near the HBM roofline.
    if n_128 >= _MIN_GRID * 128:
        tile = min(tile, _round_down(n_128 // _MIN_GRID, 128))
    # Prefer a tile that divides the (128-aligned) token count so the pad and
    # the final slice become no-ops — but not at the cost of tiny tiles.
    cand = tile
    while cand >= 128 and n_128 % cand != 0:
        cand -= 128
    if cand >= max(128, tile // 2):
        tile = cand
    n_pad = _round_up(n_128, tile)
    return tile, n_pad


def _vmem_limit_bytes(tile_n, feat, n_symboles, resident_bytes, out_buffers):
    scaling = 4 * tile_n * (out_buffers * feat + 2 + n_symboles)
    need = resident_bytes + scaling + (4 << 20)   # headroom for compiler scratch
    return int(min(_VMEM_LIMIT_CAP, max(need, 16 << 20)))


# ---------------------------------------------------------------------------
# Forward wrapper
# ---------------------------------------------------------------------------

def my_embedding_forward(x, weight, bias, *, label=False, out_buffers=2):
    """Pallas equivalent of MyEmbeddingLayer.forward.

    x:      (batch, seq) int32 indices in [0, n_symboles)
    weight: (output_size, n_symboles) float32  (PyTorch nn.Linear weight)
    bias:   (output_size,) float32
    """
    batch, seq = x.shape
    output_size, n_symboles = weight.shape
    n = batch * seq
    feat = n_symboles if label else output_size

    # Natural orientation (tokens on sublanes, features on lanes) when the
    # feature dim is lane-dense -> final layout emitted directly, no transpose.
    natural = (feat % 128 == 0)

    # Resident weight/bias bytes (x2: Pallas double-buffers input blocks even
    # when their index_map is loop-invariant).
    resident_bytes = 0 if label else 8 * (output_size * n_symboles + output_size)

    tile_n, n_pad = _choose_tile_n(n, feat, n_symboles, resident_bytes, out_buffers)
    grid = (n_pad // tile_n,)

    x_flat = x.reshape(-1).astype(jnp.int32)
    x_pad = jnp.pad(x_flat, (0, n_pad - n))   # pad with index 0; rows sliced away

    compiler_params = pltpu.CompilerParams(
        dimension_semantics=("parallel",),
        vmem_limit_bytes=_vmem_limit_bytes(
            tile_n, feat, n_symboles, resident_bytes, out_buffers),
    )

    out_kwargs = {}
    if out_buffers != 2:
        # Optional extra output buffer to hide exposed HBM writeback.
        out_kwargs["pipeline_mode"] = pl.Buffered(out_buffers)

    if natural:
        x2 = x_pad.reshape(n_pad, 1)
        in_specs = [pl.BlockSpec((tile_n, 1), lambda i: (i, 0))]
        out_spec = pl.BlockSpec((tile_n, feat), lambda i: (i, 0), **out_kwargs)
        out_shape = jax.ShapeDtypeStruct((n_pad, feat), jnp.float32)
        if label:
            kernel = functools.partial(_onehot_kernel_nat, n_symboles=n_symboles)
            args = (x2,)
        else:
            kernel = _embed_kernel_nat
            in_specs += [
                pl.BlockSpec((n_symboles, output_size), lambda i: (0, 0)),
                pl.BlockSpec((1, output_size), lambda i: (0, 0)),
            ]
            args = (x2,
                    weight.T.astype(jnp.float32),                    # (V, D)
                    bias.reshape(1, output_size).astype(jnp.float32))
        out = pl.pallas_call(
            kernel,
            out_shape=out_shape,
            grid_spec=pltpu.PrefetchScalarGridSpec(
                num_scalar_prefetch=0, grid=grid,
                in_specs=in_specs, out_specs=out_spec),
            compiler_params=compiler_params,
        )(*args)
        return out[:n].reshape(batch, seq, feat)

    # Feature dim not a 128 multiple: keep the transposed, lane-dense store
    # orientation inside the kernel (full-lane vst — matters most on v5e's
    # single store slot) and un-transpose outside.
    # TODO(synk): if the downstream consumer accepts a (feat, n) layout, return
    # out_t[:, :n] directly and drop this XLA transpose pass over the output.
    x2 = x_pad.reshape(1, n_pad)
    in_specs = [pl.BlockSpec((1, tile_n), lambda i: (0, i))]
    out_spec = pl.BlockSpec((feat, tile_n), lambda i: (0, i), **out_kwargs)
    out_shape = jax.ShapeDtypeStruct((feat, n_pad), jnp.float32)
    if label:
        kernel = functools.partial(_onehot_kernel_t, n_symboles=n_symboles)
        args = (x2,)
    else:
        kernel = _embed_kernel_t
        in_specs += [
            pl.BlockSpec((output_size, n_symboles), lambda i: (0, 0)),
            pl.BlockSpec((output_size, 1), lambda i: (0, 0)),
        ]
        args = (x2,
                weight.astype(jnp.float32),                          # (D, V)
                bias.reshape(output_size, 1).astype(jnp.float32))
    out_t = pl.pallas_call(
        kernel,
        out_shape=out_shape,
        grid_spec=pltpu.PrefetchScalarGridSpec(
            num_scalar_prefetch=0, grid=grid,
            in_specs=in_specs, out_specs=out_spec),
        compiler_params=compiler_params,
    )(*args)
    return out_t[:, :n].T.reshape(batch, seq, feat)


# ---------------------------------------------------------------------------
# Demo / correctness check
# ---------------------------------------------------------------------------

if __name__ == "__main__":
    def run_case(n_symboles, output_size, batch, seq, key):
        k_w, k_b, k_x = jax.random.split(key, 3)
        # PyTorch-style Linear init: U(-1/sqrt(in), 1/sqrt(in)).
        bound = 1.0 / (n_symboles ** 0.5)
        weight = jax.random.uniform(k_w, (output_size, n_symboles),
                                    minval=-bound, maxval=bound,
                                    dtype=jnp.float32)
        bias = jax.random.uniform(k_b, (output_size,),
                                  minval=-bound, maxval=bound,
                                  dtype=jnp.float32)
        x = jax.random.randint(k_x, (batch, seq), 0, n_symboles,
                               dtype=jnp.int32)

        out = jax.block_until_ready(
            my_embedding_forward(x, weight, bias, label=False))
        oh = jax.block_until_ready(
            my_embedding_forward(x, weight, bias, label=True))

        one_hot_ref = jax.nn.one_hot(x, n_symboles, dtype=jnp.float32)
        ref = one_hot_ref @ weight.T + bias
        assert out.shape == (batch, seq, output_size)
        assert oh.shape == (batch, seq, n_symboles)
        assert jnp.allclose(out, ref, atol=1e-5), "projection mismatch"
        assert jnp.allclose(oh, one_hot_ref), "one-hot mismatch"

    key = jax.random.PRNGKey(0)
    k1, k2 = jax.random.split(key)

    # Small feature dims (< 128) -> transposed-store kernels + wrapper transpose.
    run_case(n_symboles=32, output_size=32, batch=2, seq=8, key=k1)

    # Lane-dense feature dims (128 multiples) -> natural-orientation kernels,
    # final layout emitted directly (no XLA transpose over the output).
    run_case(n_symboles=128, output_size=128, batch=2, seq=8, key=k2)

    print("KERNEL_OK")
</pallas_src>

<mosaic_0001>
module attributes {stable_mosaic.version = 11 : i64} {
  func.func @_embed_kernel_t(%arg0: i32, %arg1: memref<1x128xi32, #tpu.memory_space<vmem>>, %arg2: memref<32x32xf32, #tpu.memory_space<vmem>>, %arg3: memref<32x1xf32, #tpu.memory_space<vmem>>, %arg4: memref<32x128xf32, #tpu.memory_space<vmem>>) attributes {dimension_semantics = [#tpu.dimension_semantics<parallel>], iteration_bounds = array<i64: 1>, scalar_prefetch = 0 : i64, scratch_operands = 0 : i64, tpu.core_type = #tpu.core_type<tc>, window_params = [{transform_indices = @transform_0, window_bounds = array<i64: 1, 128>}, {pipeline_mode = #tpu.pipeline_mode<synchronous>, transform_indices = @transform_1, window_bounds = array<i64: 32, 32>}, {pipeline_mode = #tpu.pipeline_mode<synchronous>, transform_indices = @transform_2, window_bounds = array<i64: 32, 1>}, {transform_indices = @transform_3, window_bounds = array<i64: 32, 128>}]} {
    %c0 = arith.constant 0 : index
    %c0_0 = arith.constant 0 : index
    %0 = vector.load %arg1[%c0, %c0_0] : memref<1x128xi32, #tpu.memory_space<vmem>>, vector<1x128xi32>
    %1 = tpu.iota {dimensions = array<i32: 0>} : vector<32x128xi32>
    %2 = vector.broadcast %0 : vector<1x128xi32> to vector<32x128xi32>
    %3 = arith.cmpi eq, %1, %2 : vector<32x128xi32>
    %4 = arith.extui %3 : vector<32x128xi1> to vector<32x128xi32>
    %5 = arith.sitofp %4 : vector<32x128xi32> to vector<32x128xf32>
    %c0_1 = arith.constant 0 : index
    %c0_2 = arith.constant 0 : index
    %6 = vector.load %arg2[%c0_1, %c0_2] : memref<32x32xf32, #tpu.memory_space<vmem>>, vector<32x32xf32>
    %cst = arith.constant dense<0.000000e+00> : vector<32x128xf32>
    %7 = tpu.matmul %6, %5, %cst {dimension_numbers = #tpu.dot_dimension_numbers<[1], [0], [0], [1], [0, 0, 1, 1], [], []>} : vector<32x32xf32>, vector<32x128xf32>, vector<32x128xf32> -> vector<32x128xf32>
    %c0_3 = arith.constant 0 : index
    %c0_4 = arith.constant 0 : index
    %8 = vector.load %arg3[%c0_3, %c0_4] : memref<32x1xf32, #tpu.memory_space<vmem>>, vector<32x1xf32>
    %9 = vector.broadcast %8 : vector<32x1xf32> to vector<32x128xf32>
    %10 = arith.addf %7, %9 : vector<32x128xf32>
    %c0_5 = arith.constant 0 : index
    %c0_6 = arith.constant 0 : index
    %11 = vector.load %arg4[%c0_5, %c0_6] : memref<32x128xf32, #tpu.memory_space<vmem>>, vector<32x128xf32>
    tpu.vector_store %arg4[%c0_5, %c0_6], %10 {strides = array<i32>} : memref<32x128xf32, #tpu.memory_space<vmem>>, vector<32x128xf32>,
    return
  }
  func.func @transform_0(%arg0: i32) -> (i32, i32) {
    %c0_i32 = arith.constant 0 : i32
    %c0_i32_0 = arith.constant 0 : i32
    return %c0_i32, %arg0 : i32, i32
  }
  func.func @transform_1(%arg0: i32) -> (i32, i32) {
    %c0_i32 = arith.constant 0 : i32
    %c0_i32_0 = arith.constant 0 : i32
    %c0_i32_1 = arith.constant 0 : i32
    return %c0_i32, %c0_i32_0 : i32, i32
  }
  func.func @transform_2(%arg0: i32) -> (i32, i32) {
    %c0_i32 = arith.constant 0 : i32
    %c0_i32_0 = arith.constant 0 : i32
    %c0_i32_1 = arith.constant 0 : i32
    return %c0_i32, %c0_i32_0 : i32, i32
  }
  func.func @transform_3(%arg0: i32) -> (i32, i32) {
    %c0_i32 = arith.constant 0 : i32
    %c0_i32_0 = arith.constant 0 : i32
    return %c0_i32, %arg0 : i32, i32
  }
}

</mosaic_0001>

<llo_original>
// kernel: tpu_custom_call.1
$region0: #{tpu_custom_call.1}
  #allocation0 [shape = 'u32[]', space=smem, size = 0x4, offset = 0x4, fixed_abs, tag = 'smem constant byte address 0x4 - core index']
  #allocation1 [shape = 'u32[72,128]{1,0:T(1,128)}', space=vmem, size = 0x9000, scoped, tag = 'internal scratch']
  %s0 = inlined_call_operand.vmem [shape: s32[1,128], index: 0, kind: input, shape index: {}]
  %s1 = inlined_call_operand.vmem [shape: f32[32,32], index: 1, kind: input, shape index: {}]
  %s2 = inlined_call_operand.vmem [shape: f32[32,1], index: 2, kind: input, shape index: {}]
  %s3 = inlined_call_operand.hbm [shape: f32[32,128], index: 3, kind: output, shape index: {}]
  %s4 = sld [smem:[#allocation0]]
  $region22: #{tpu_custom_call.1} parent=0
    _
  %s6 = ssub.s32 1, %s4
  %s7 = scalar_select 0, %s6, %s4
  $region1: #{tpu_custom_call.1} parent=0
    #allocation2 [shape = 'u8[16384]{0}', space=vmem, size = 0x4000, scoped, tag = 'output window, operand 0, single buffered']
    #allocation3 [shape = 's32[1]{0}', space=sflag, size = 0x4, scoped, tag = 'scoped memory for tpu_custom_call.1']
    %8 = vsyncpa [#allocation3], 0
    // Predicated region
    $region2: #{tpu_custom_call.1} parent=1 // pred_check
      _
    $region3: #{tpu_custom_call.1} parent=1 // pred_check_branch
      %10 = sbr.rel (0) target = $region5
    $region4: #{tpu_custom_call.1} parent=1 // pred_region
      _
    $region5: #{tpu_custom_call.1} parent=1 // pred_fallthru
      _
    // Predicated region
    $region6: #{tpu_custom_call.1} parent=1 // pred_check
      _
    $region7: #{tpu_custom_call.1} parent=1 // pred_check_branch
      %12 = sbr.rel (0) target = $region9
    $region8: #{tpu_custom_call.1} parent=1 // pred_region
      _
    $region9: #{tpu_custom_call.1} parent=1 // pred_fallthru
      _
    // Predicated region
    $region10: #{tpu_custom_call.1} parent=1 // pred_check
      _
    $region11: #{tpu_custom_call.1} parent=1 // pred_check_branch
      %14 = sbr.rel (0) target = $region13
    $region12: #{tpu_custom_call.1} parent=1 // pred_region
      _
    $region13: #{tpu_custom_call.1} parent=1 // pred_fallthru
      _
    %v15 = vld [vmem:[%s0] sm:$0x1]
    %v16 = vlaneseq
    %v17 = vshrl.u32 %v16, 7
    %v18 = vadd.s32 %v17, 8
    %v19 = vadd.s32 %v17, 16
    %v20 = vadd.s32 %v17, 24
    %v21 = vperm.slane %v15, 0
    %vm22 = vcmp.eq.s32.totalorder %v17, %v21
    %vm23 = vcmp.eq.s32.totalorder %v18, %v21
    %vm24 = vcmp.eq.s32.totalorder %v19, %v21
    %vm25 = vcmp.eq.s32.totalorder %v20, %v21
    %v26 = vsel %vm22, 1, 0
    %v27 = vsel %vm23, 1, 0
    %v28 = vsel %vm24, 1, 0
    %v29 = vsel %vm25, 1, 0
    %v30 = vcvt.s32.f32 %v26
    %v31 = vcvt.s32.f32 %v27
    %v32 = vcvt.s32.f32 %v28
    %v33 = vcvt.s32.f32 %v29
    %v34 = vld [vmem:[%s1] sm:$0xff]
    %v35 = vld [vmem:[%s1 + $0x8] sm:$0xff]
    %v36 = vld [vmem:[%s1 + $0x10] sm:$0xff]
    %v37 = vld [vmem:[%s1 + $0x18] sm:$0xff]
    %v38 = vld [vmem:[%s2] sm:$0xff]
    %v39 = vld [vmem:[%s2 + $0x8] sm:$0xff]
    %v40 = vld [vmem:[%s2 + $0x10] sm:$0xff]
    %v41 = vld [vmem:[%s2 + $0x18] sm:$0xff]
    %43 = vset.pattern.permute.xlu0 0
    %44 = vperm.xlu0 %43, %v38
    %v45 = vpop.permute.xlu0 %44
    %48 = vset.pattern.permute.xlu0 0
    %49 = vperm.xlu0 %48, %v39
    %v50 = vpop.permute.xlu0 %49
    %53 = vset.pattern.permute.xlu0 0
    %54 = vperm.xlu0 %53, %v40
    %v55 = vpop.permute.xlu0 %54
    %58 = vset.pattern.permute.xlu0 0
    %59 = vperm.xlu0 %58, %v41
    %v60 = vpop.permute.xlu0 %59
    %vm62 = vcmask 261120
    %v64 = vsel %vm62, %v34, 0
    %v67 = vsel %vm62, %v35, 0
    %v70 = vsel %vm62, %v36, 0
    %v73 = vsel %vm62, %v37, 0
    %75 = vmatpush.msra.mxu0 0.0
    %76 = vmatpush.msra.mxu0 0.0
    %77 = vmatpush.msra.mxu0 0.0
    %78 = vmatpush.msra.mxu0 0.0
    %79 = vmatpush.msra.mxu0 0.0
    %80 = vmatpush.msra.mxu0 0.0
    %81 = vmatpush.msra.mxu0 0.0
    %82 = vmatpush.msra.mxu0 0.0
    %83 = vmatpush.msra.mxu0 0.0
    %84 = vmatpush.msra.mxu0 0.0
    %85 = vmatpush.msra.mxu0 0.0
    %86 = vmatpush.msra.mxu0 0.0
    %87 = vmatpush.msra.mxu0 %v33
    %88 = vmatpush.msra.mxu0 %v32
    %89 = vmatpush.msra.mxu0 %v31
    %90 = vmatpush.msra.mxu0 %v30
    %91 = vmatmul.f32.gmra.mxu0 %v64
    %v92 = vpop.f32.mrf.mxu0
    %v93 = vadd.f32 %v45, %v92
    %94 = vmatmul.f32.gmra.mxu0 %v67
    %v95 = vpop.f32.mrf.mxu0
    %v96 = vadd.f32 %v50, %v95
    %97 = vmatmul.f32.gmra.mxu0 %v70
    %v98 = vpop.f32.mrf.mxu0
    %v99 = vadd.f32 %v55, %v98
    %100 = vmatmul.f32.gmra.mxu0 %v73
    %v101 = vpop.f32.mrf.mxu0
    %v102 = vadd.f32 %v60, %v101
    %103 = vdwg.mxu0
    %104 = vst [vmem:[#allocation2] sm:$0xff] %v93
    %105 = vst [vmem:[#allocation2 + $0x8] sm:$0xff] %v96
    %106 = vst [vmem:[#allocation2 + $0x10] sm:$0xff] %v99
    %107 = vst [vmem:[#allocation2 + $0x18] sm:$0xff] %v102
    // Predicated region
    $region14: #{tpu_custom_call.1} parent=1 // pred_check
      _
    $region15: #{tpu_custom_call.1} parent=1 // pred_check_branch
      %109 = sbr.rel (0) target = $region17
    $region16: #{tpu_custom_call.1} parent=1 // pred_region
      %111 = vsyncadd [#allocation3], 0
      %s112 = sshll.u32 [#allocation2], 4
      %s113 = int_to_ptr.vmem [resolvable:$true] %s112
      %s114 = sshll.u32 %s3, 4
      %s115 = int_to_ptr.hbm [resolvable:$true] %s114
      %120 = dma.vmem_to_hbm [thread:$0]  %s113, 512, %s115, [#allocation3], 128, 128, 8
    $region17: #{tpu_custom_call.1} parent=1 // pred_fallthru
      _
    // Predicated region
    $region18: #{tpu_custom_call.1} parent=1 // pred_check
      _
    $region19: #{tpu_custom_call.1} parent=1 // pred_check_branch
      %122 = sbr.rel (0) target = $region21
    $region20: #{tpu_custom_call.1} parent=1 // pred_region
      %124 = dma.done [#allocation3], 512
    $region21: #{tpu_custom_call.1} parent=1 // pred_fallthru
      _
    %125 = vsyncpa [#allocation3], 1

</llo_original>
